<compile_context>
chip_gen: v6e
topology: v6e:2x2x1
jax: 0.10.0
libtpu: 0.0.40
codegen_flags: <defaults>
</compile_context>

<pallas_src>
import functools
import math

import jax
import jax.numpy as jnp
import numpy as np
from jax.experimental import pallas as pl
from jax.experimental.pallas import tpu as pltpu


def _ru(n, m):
    return (n + m - 1) // m * m


_TM_MAX = 512  # M-tile cap: VMEM-safe (double-buffered) on v5e/v6e/v7x.


# ----------------------------- Pallas kernels ------------------------------

def _linear_kernel(x_ref, w_ref, b_ref, o_ref, *, activation):
    # (TM, K) bf16 @ (K, Np) bf16 -> f32 accumulate on the MXU, +bias (+ReLU).
    acc = jnp.dot(x_ref[...], w_ref[...], preferred_element_type=jnp.float32)
    acc = acc + b_ref[...]
    if activation == "relu":
        acc = jnp.maximum(acc, 0.0)
    o_ref[...] = acc


def _attn_kernel(q_ref, k_ref, v_ref, bias_ref, o_ref, *, scale):
    # One (batch * head) slice per grid step: softmax(q k^T * scale + bias) v.
    s = jnp.einsum("bqd,bkd->bqk", q_ref[...], k_ref[...],
                   preferred_element_type=jnp.float32) * scale + bias_ref[...]
    s = s - jnp.max(s, axis=-1, keepdims=True)
    p = jnp.exp(s)
    p = p / jnp.sum(p, axis=-1, keepdims=True)
    o_ref[...] = jnp.einsum("bqk,bkd->bqd", p.astype(v_ref.dtype), v_ref[...],
                            preferred_element_type=jnp.float32)


def _add_ln_kernel(x_ref, r_ref, g_ref, b_ref, o_ref, *, eps):
    # LayerNorm(x + r) over the last dim, f32 throughout.
    y = x_ref[...] + r_ref[...]
    mu = jnp.mean(y, axis=-1, keepdims=True)
    yc = y - mu
    var = jnp.mean(yc * yc, axis=-1, keepdims=True)
    inv = jax.lax.rsqrt(var + eps)
    o_ref[...] = yc * inv * g_ref[...] + b_ref[...]


# ------------------------------ JAX wrappers --------------------------------

def _pad_rows(x, mp):
    m = x.shape[0]
    if mp == m:
        return x
    return jnp.pad(x, ((0, mp - m), (0, 0)))


def pallas_linear(x, w_bf16, b_pad, n_out, *, activation=None):
    """x: (M, K) f32.  w_bf16: (K, Np) bf16 pre-padded.  b_pad: (1, Np) f32."""
    M, K = x.shape
    Kw, Np = w_bf16.shape
    assert K == Kw
    tm = min(_TM_MAX, _ru(M, 8))
    mp = _ru(M, tm)
    xp = _pad_rows(x, mp).astype(jnp.bfloat16)

    cost = pl.CostEstimate(
        flops=2 * mp * K * Np,
        transcendentals=0,
        bytes_accessed=mp * K * 2 + K * Np * 2 + Np * 4 + mp * Np * 4,
    )
    out = pl.pallas_call(
        functools.partial(_linear_kernel, activation=activation),
        out_shape=jax.ShapeDtypeStruct((mp, Np), jnp.float32),
        grid=(mp // tm,),
        in_specs=[
            pl.BlockSpec((tm, K), lambda i: (i, 0)),
            pl.BlockSpec((K, Np), lambda i: (0, 0)),
            pl.BlockSpec((1, Np), lambda i: (0, 0)),
        ],
        out_specs=pl.BlockSpec((tm, Np), lambda i: (i, 0)),
        compiler_params=pltpu.CompilerParams(dimension_semantics=("parallel",)),
        cost_estimate=cost,
    )(xp, w_bf16, b_pad)
    return out[:M, :n_out]


def pallas_attention(q, k, v, bias, *, scale):
    """q, k, v: (BH, S, Dh) f32;  bias: (BH, S, S) f32 additive mask."""
    BH, S, Dh = q.shape
    q16 = q.astype(jnp.bfloat16)
    k16 = k.astype(jnp.bfloat16)
    v16 = v.astype(jnp.bfloat16)
    cost = pl.CostEstimate(
        flops=4 * BH * S * S * Dh,
        transcendentals=BH * S * S,
        bytes_accessed=3 * BH * S * Dh * 2 + BH * S * S * 4 + BH * S * Dh * 4,
    )
    return pl.pallas_call(
        functools.partial(_attn_kernel, scale=scale),
        out_shape=jax.ShapeDtypeStruct((BH, S, Dh), jnp.float32),
        grid=(BH,),
        in_specs=[
            pl.BlockSpec((1, S, Dh), lambda i: (i, 0, 0)),
            pl.BlockSpec((1, S, Dh), lambda i: (i, 0, 0)),
            pl.BlockSpec((1, S, Dh), lambda i: (i, 0, 0)),
            pl.BlockSpec((1, S, S), lambda i: (i, 0, 0)),
        ],
        out_specs=pl.BlockSpec((1, S, Dh), lambda i: (i, 0, 0)),
        compiler_params=pltpu.CompilerParams(dimension_semantics=("parallel",)),
        cost_estimate=cost,
    )(q16, k16, v16, bias)


def pallas_add_layernorm(x, r, gamma, beta, *, eps=1e-5):
    """LayerNorm(x + r) over the last dim; x, r: (M, D) f32."""
    M, D = x.shape
    tm = min(_TM_MAX, _ru(M, 8))
    mp = _ru(M, tm)
    xp = _pad_rows(x, mp)
    rp = _pad_rows(r, mp)
    g2 = gamma.reshape(1, D).astype(jnp.float32)
    b2 = beta.reshape(1, D).astype(jnp.float32)
    out = pl.pallas_call(
        functools.partial(_add_ln_kernel, eps=eps),
        out_shape=jax.ShapeDtypeStruct((mp, D), jnp.float32),
        grid=(mp // tm,),
        in_specs=[
            pl.BlockSpec((tm, D), lambda i: (i, 0)),
            pl.BlockSpec((tm, D), lambda i: (i, 0)),
            pl.BlockSpec((1, D), lambda i: (0, 0)),
            pl.BlockSpec((1, D), lambda i: (0, 0)),
        ],
        out_specs=pl.BlockSpec((tm, D), lambda i: (i, 0)),
        compiler_params=pltpu.CompilerParams(dimension_semantics=("parallel",)),
    )(xp, rp, g2, b2)
    return out[:M]


# ------------------------------ Parameters -----------------------------------

class _LinearParams:
    """Linear layer stored pre-transposed (in, out), pre-padded to a lane-dense
    output width (multiple of 128) and pre-cast to bf16 for the MXU."""

    def __init__(self, key, in_dim, out_dim):
        kw, kb = jax.random.split(key)
        w = jax.random.normal(kw, (in_dim, out_dim), jnp.float32) / np.sqrt(in_dim)
        b = 0.01 * jax.random.normal(kb, (out_dim,), jnp.float32)
        self.out_dim = out_dim
        npad = _ru(out_dim, 128)
        self.w_f32 = w                       # kept for the plain-JAX reference
        self.b_f32 = b
        self.w = jnp.pad(w, ((0, 0), (0, npad - out_dim))).astype(jnp.bfloat16)
        self.b = jnp.pad(b, (0, npad - out_dim)).reshape(1, npad)

    def __call__(self, x, activation=None):
        return pallas_linear(x, self.w, self.b, self.out_dim, activation=activation)


class _EncoderLayerParams:
    def __init__(self, key, d_model, nhead, dim_feedforward):
        assert d_model % nhead == 0
        ks = jax.random.split(key, 10)
        self.d_model, self.nhead = d_model, nhead
        self.head_dim = d_model // nhead
        self.q_proj = _LinearParams(ks[0], d_model, d_model)
        self.k_proj = _LinearParams(ks[1], d_model, d_model)
        self.v_proj = _LinearParams(ks[2], d_model, d_model)
        self.out_proj = _LinearParams(ks[3], d_model, d_model)
        self.linear1 = _LinearParams(ks[4], d_model, dim_feedforward)
        self.linear2 = _LinearParams(ks[5], dim_feedforward, d_model)
        self.ln1_g = 1.0 + 0.1 * jax.random.normal(ks[6], (d_model,), jnp.float32)
        self.ln1_b = 0.1 * jax.random.normal(ks[7], (d_model,), jnp.float32)
        self.ln2_g = 1.0 + 0.1 * jax.random.normal(ks[8], (d_model,), jnp.float32)
        self.ln2_b = 0.1 * jax.random.normal(ks[9], (d_model,), jnp.float32)


class TransformerEncoderPallas:
    """Pallas re-implementation of DETR TransformerEncoder.forward (eval mode)."""

    def __init__(self, d_model=32, nhead=4, dim_feedforward=64, num_layers=2,
                 with_final_norm=False, seed=0):
        key = jax.random.PRNGKey(seed)
        klayer, knorm = jax.random.split(key)
        # _get_clones => all layers share identical (initial) parameters.
        self.layer = _EncoderLayerParams(klayer, d_model, nhead, dim_feedforward)
        self.num_layers = num_layers
        self.d_model = d_model
        if with_final_norm:
            self.norm_g = 1.0 + 0.1 * jax.random.normal(knorm, (d_model,), jnp.float32)
            self.norm_b = jnp.zeros((d_model,), jnp.float32)
        else:
            self.norm_g = None
            self.norm_b = None

    # mask (src_mask) and src_key_padding_mask folded into one additive bias.
    def _attn_bias(self, S, B, mask, src_key_padding_mask):
        H = self.layer.nhead
        bias = jnp.zeros((B, H, S, S), jnp.float32)
        if src_key_padding_mask is not None:
            kp = jnp.where(src_key_padding_mask, -1e9, 0.0).astype(jnp.float32)  # (B, S)
            bias = bias + kp[:, None, None, :]
        if mask is not None:
            if mask.dtype == jnp.bool_:
                am = jnp.where(mask, -1e9, 0.0).astype(jnp.float32)
            else:
                am = mask.astype(jnp.float32)
            bias = bias + am[None, None, :, :]
        return bias.reshape(B * H, S, S)

    def _layer_forward(self, src, bias, pos):
        p = self.layer
        S, B, E = src.shape
        H, Dh = p.nhead, p.head_dim
        q_in = src if pos is None else src + pos          # with_pos_embed
        xq = q_in.reshape(S * B, E)
        xv = src.reshape(S * B, E)

        q = p.q_proj(xq)
        k = p.k_proj(xq)
        v = p.v_proj(xv)

        def to_heads(t):
            return t.reshape(S, B, H, Dh).transpose(1, 2, 0, 3).reshape(B * H, S, Dh)

        attn = pallas_attention(to_heads(q), to_heads(k), to_heads(v), bias,
                                scale=1.0 / math.sqrt(Dh))           # (B*H, S, Dh)
        attn = attn.reshape(B, H, S, Dh).transpose(2, 0, 1, 3).reshape(S * B, E)
        attn = p.out_proj(attn)

        h1 = pallas_add_layernorm(xv, attn, p.ln1_g, p.ln1_b)        # norm1(src + src2)
        ff = p.linear1(h1, activation="relu")
        ff = p.linear2(ff)
        h2 = pallas_add_layernorm(h1, ff, p.ln2_g, p.ln2_b)          # norm2(src + src2)
        return h2.reshape(S, B, E)

    def forward(self, src, mask=None, src_key_padding_mask=None, pos=None):
        S, B, E = src.shape
        bias = self._attn_bias(S, B, mask, src_key_padding_mask)
        output = src
        for _ in range(self.num_layers):
            output = self._layer_forward(output, bias, pos)
        if self.norm_g is not None:
            out2 = pallas_add_layernorm(output.reshape(S * B, E),
                                        jnp.zeros((S * B, E), jnp.float32),
                                        self.norm_g, self.norm_b)
            output = out2.reshape(S, B, E)
        return output


# ------------------------ plain-JAX reference (same numerics) ----------------

def _ref_linear(x, lp, activation=None):
    y = jnp.dot(x.astype(jnp.bfloat16), lp.w_f32.astype(jnp.bfloat16),
                preferred_element_type=jnp.float32) + lp.b_f32[None, :]
    if activation == "relu":
        y = jnp.maximum(y, 0.0)
    return y


def _ref_layernorm(y, g, b, eps=1e-5):
    mu = jnp.mean(y, axis=-1, keepdims=True)
    yc = y - mu
    var = jnp.mean(yc * yc, axis=-1, keepdims=True)
    return yc * jax.lax.rsqrt(var + eps) * g[None, :] + b[None, :]


def _ref_forward(model, src, mask=None, src_key_padding_mask=None, pos=None):
    p = model.layer
    S, B, E = src.shape
    H, Dh = p.nhead, p.head_dim
    scale = 1.0 / math.sqrt(Dh)
    bias = model._attn_bias(S, B, mask, src_key_padding_mask).reshape(B, H, S, S)
    out = src
    for _ in range(model.num_layers):
        q_in = out if pos is None else out + pos
        xq = q_in.reshape(S * B, E)
        xv = out.reshape(S * B, E)
        q = _ref_linear(xq, p.q_proj).reshape(S, B, H, Dh).transpose(1, 2, 0, 3)
        k = _ref_linear(xq, p.k_proj).reshape(S, B, H, Dh).transpose(1, 2, 0, 3)
        v = _ref_linear(xv, p.v_proj).reshape(S, B, H, Dh).transpose(1, 2, 0, 3)
        s = jnp.einsum("bhqd,bhkd->bhqk", q.astype(jnp.bfloat16),
                       k.astype(jnp.bfloat16),
                       preferred_element_type=jnp.float32) * scale + bias
        s = s - jnp.max(s, axis=-1, keepdims=True)
        w = jnp.exp(s)
        w = w / jnp.sum(w, axis=-1, keepdims=True)
        a = jnp.einsum("bhqk,bhkd->bhqd", w.astype(jnp.bfloat16),
                       v.astype(jnp.bfloat16),
                       preferred_element_type=jnp.float32)
        a = a.transpose(2, 0, 1, 3).reshape(S * B, E)
        a = _ref_linear(a, p.out_proj)
        h1 = _ref_layernorm(xv + a, p.ln1_g, p.ln1_b)
        ff = _ref_linear(_ref_linear(h1, p.linear1, "relu"), p.linear2)
        h2 = _ref_layernorm(h1 + ff, p.ln2_g, p.ln2_b)
        out = h2.reshape(S, B, E)
    if model.norm_g is not None:
        out = _ref_layernorm(out.reshape(S * B, E),
                             model.norm_g, model.norm_b).reshape(S, B, E)
    return out


# ----------------------------------- demo ------------------------------------

if __name__ == "__main__":
    key = jax.random.PRNGKey(0)
    S, B, d_model, nhead, dim_ff, num_layers = 8, 2, 32, 4, 64, 2
    k1, k2 = jax.random.split(key)
    src = jax.random.normal(k1, (S, B, d_model), jnp.float32)         # (seq, batch, d_model)
    pos = 0.1 * jax.random.normal(k2, (S, B, d_model), jnp.float32)
    # DETR-style key padding mask: True where padded (2nd sequence: last 3 padded)
    valid = jnp.array([S, S - 3])
    src_key_padding_mask = jnp.arange(S)[None, :] >= valid[:, None]   # (B, S) bool

    model = TransformerEncoderPallas(d_model=d_model, nhead=nhead,
                                     dim_feedforward=dim_ff,
                                     num_layers=num_layers)
    out = model.forward(src, mask=None,
                        src_key_padding_mask=src_key_padding_mask, pos=pos)
    out = jax.block_until_ready(out)

    ref = _ref_forward(model, src, None, src_key_padding_mask, pos)
    ref = jax.block_until_ready(ref)

    assert out.shape == (S, B, d_model), out.shape
    assert out.dtype == jnp.float32
    np.testing.assert_allclose(np.asarray(out), np.asarray(ref), rtol=2e-3, atol=2e-3)

    print("KERNEL_OK")
</pallas_src>

<mosaic_0001>
module attributes {stable_mosaic.version = 11 : i64} {
  func.func @_linear_kernel(%arg0: i32, %arg1: memref<16x32xbf16, #tpu.memory_space<vmem>>, %arg2: memref<32x128xbf16, #tpu.memory_space<vmem>>, %arg3: memref<1x128xf32, #tpu.memory_space<vmem>>, %arg4: memref<16x128xf32, #tpu.memory_space<vmem>>) attributes {dimension_semantics = [#tpu.dimension_semantics<parallel>], iteration_bounds = array<i64: 1>, scalar_prefetch = 0 : i64, scratch_operands = 0 : i64, tpu.core_type = #tpu.core_type<tc>, window_params = [{transform_indices = @transform_0, window_bounds = array<i64: 16, 32>}, {pipeline_mode = #tpu.pipeline_mode<synchronous>, transform_indices = @transform_1, window_bounds = array<i64: 32, 128>}, {pipeline_mode = #tpu.pipeline_mode<synchronous>, transform_indices = @transform_2, window_bounds = array<i64: 1, 128>}, {transform_indices = @transform_3, window_bounds = array<i64: 16, 128>}]} {
    %c0 = arith.constant 0 : index
    %c0_0 = arith.constant 0 : index
    %0 = vector.load %arg1[%c0, %c0_0] : memref<16x32xbf16, #tpu.memory_space<vmem>>, vector<16x32xbf16>
    %c0_1 = arith.constant 0 : index
    %c0_2 = arith.constant 0 : index
    %1 = vector.load %arg2[%c0_1, %c0_2] : memref<32x128xbf16, #tpu.memory_space<vmem>>, vector<32x128xbf16>
    %cst = arith.constant dense<0.000000e+00> : vector<16x128xf32>
    %2 = tpu.matmul %0, %1, %cst {dimension_numbers = #tpu.dot_dimension_numbers<[1], [0], [0], [1], [0, 0, 1, 1], [], []>} : vector<16x32xbf16>, vector<32x128xbf16>, vector<16x128xf32> -> vector<16x128xf32>
    %c0_3 = arith.constant 0 : index
    %c0_4 = arith.constant 0 : index
    %3 = vector.load %arg3[%c0_3, %c0_4] : memref<1x128xf32, #tpu.memory_space<vmem>>, vector<1x128xf32>
    %4 = vector.broadcast %3 : vector<1x128xf32> to vector<16x128xf32>
    %5 = arith.addf %2, %4 : vector<16x128xf32>
    %c0_5 = arith.constant 0 : index
    %c0_6 = arith.constant 0 : index
    %6 = vector.load %arg4[%c0_5, %c0_6] : memref<16x128xf32, #tpu.memory_space<vmem>>, vector<16x128xf32>
    tpu.vector_store %arg4[%c0_5, %c0_6], %5 {strides = array<i32>} : memref<16x128xf32, #tpu.memory_space<vmem>>, vector<16x128xf32>,
    return
  }
  func.func @transform_0(%arg0: i32) -> (i32, i32) {
    %c0_i32 = arith.constant 0 : i32
    %c0_i32_0 = arith.constant 0 : i32
    return %arg0, %c0_i32 : i32, i32
  }
  func.func @transform_1(%arg0: i32) -> (i32, i32) {
    %c0_i32 = arith.constant 0 : i32
    %c0_i32_0 = arith.constant 0 : i32
    %c0_i32_1 = arith.constant 0 : i32
    return %c0_i32, %c0_i32_0 : i32, i32
  }
  func.func @transform_2(%arg0: i32) -> (i32, i32) {
    %c0_i32 = arith.constant 0 : i32
    %c0_i32_0 = arith.constant 0 : i32
    %c0_i32_1 = arith.constant 0 : i32
    return %c0_i32, %c0_i32_0 : i32, i32
  }
  func.func @transform_3(%arg0: i32) -> (i32, i32) {
    %c0_i32 = arith.constant 0 : i32
    %c0_i32_0 = arith.constant 0 : i32
    return %arg0, %c0_i32 : i32, i32
  }
}

</mosaic_0001>

<llo_original>
// kernel: tpu_custom_call.1
$region0: #{tpu_custom_call.1}
  #allocation0 [shape = 'u32[]', space=smem, size = 0x4, offset = 0x4, fixed_abs, tag = 'smem constant byte address 0x4 - core index']
  #allocation1 [shape = 'u32[144,128]{1,0:T(1,128)}', space=vmem, size = 0x12000, scoped, tag = 'internal scratch']
  %s0 = inlined_call_operand.hbm [shape: bf16[16,32], index: 0, kind: input, shape index: {}]
  %s1 = inlined_call_operand.hbm [shape: bf16[32,128], index: 1, kind: input, shape index: {}]
  %s2 = inlined_call_operand.vmem [shape: f32[1,128], index: 2, kind: input, shape index: {}]
  %s3 = inlined_call_operand.hbm [shape: f32[16,128], index: 3, kind: output, shape index: {}]
  %s4 = sld [smem:[#allocation0]]
  $region30: #{tpu_custom_call.1} parent=0
    _
  %s6 = ssub.s32 1, %s4
  %s7 = scalar_select 0, %s6, %s4
  $region1: #{tpu_custom_call.1} parent=0
    #allocation2 [shape = 'u8[4096]{0}', space=vmem, size = 0x1000, scoped, tag = 'input window, operand 0, single buffered']
    #allocation3 [shape = 's32[1]{0}', space=sflag, size = 0x4, scoped, tag = 'scoped memory for tpu_custom_call.1']
    #allocation4 [shape = 's32[1]{0}', space=sflag, size = 0x4, scoped, tag = 'scoped memory for tpu_custom_call.1']
    #allocation5 [shape = 'u8[8192]{0}', space=vmem, size = 0x2000, scoped, tag = 'input window, operand 1, single buffered']
    #allocation6 [shape = 's32[1]{0}', space=sflag, size = 0x4, scoped, tag = 'scoped memory for tpu_custom_call.1']
    #allocation7 [shape = 'u8[8192]{0}', space=vmem, size = 0x2000, scoped, tag = 'output window, operand 0, single buffered']
    %8 = vsyncpa [#allocation3], 0
    %9 = vsyncpa [#allocation6], 0
    %10 = vsyncpa [#allocation4], 0
    // Predicated region
    $region2: #{tpu_custom_call.1} parent=1 // pred_check
      _
    $region3: #{tpu_custom_call.1} parent=1 // pred_check_branch
      %12 = sbr.rel (0) target = $region5
    $region4: #{tpu_custom_call.1} parent=1 // pred_region
      %s14 = ssub.s32 128, 128
      %15 = vsyncadd [#allocation3], %s14
      %s16 = sshll.u32 [#allocation2], 4
      %s17 = int_to_ptr.vmem [resolvable:$true] %s16
      %22 = dma.hbm_to_vmem [thread:$0]  %s0, 128, %s17, [#allocation3], 64, 64, 4
    $region5: #{tpu_custom_call.1} parent=1 // pred_fallthru
      _
    // Predicated region
    $region6: #{tpu_custom_call.1} parent=1 // pred_check
      _
    $region7: #{tpu_custom_call.1} parent=1 // pred_check_branch
      %24 = sbr.rel (0) target = $region9
    $region8: #{tpu_custom_call.1} parent=1 // pred_region
      %s26 = ssub.s32 256, 256
      %27 = vsyncadd [#allocation6], %s26
      %s28 = sshll.u32 [#allocation5], 4
      %s29 = int_to_ptr.vmem [resolvable:$true] %s28
      %34 = dma.hbm_to_vmem [thread:$0]  %s1, 256, %s29, [#allocation6], 64, 64, 4
    $region9: #{tpu_custom_call.1} parent=1 // pred_fallthru
      _
    // Predicated region
    $region10: #{tpu_custom_call.1} parent=1 // pred_check
      _
    $region11: #{tpu_custom_call.1} parent=1 // pred_check_branch
      %36 = sbr.rel (0) target = $region13
    $region12: #{tpu_custom_call.1} parent=1 // pred_region
      _
    $region13: #{tpu_custom_call.1} parent=1 // pred_fallthru
      _
    // Predicated region
    $region14: #{tpu_custom_call.1} parent=1 // pred_check
      _
    $region15: #{tpu_custom_call.1} parent=1 // pred_check_branch
      %38 = sbr.rel (0) target = $region17
    $region16: #{tpu_custom_call.1} parent=1 // pred_region
      %39 = dma.done [#allocation3], 128
    $region17: #{tpu_custom_call.1} parent=1 // pred_fallthru
      _
    // Predicated region
    $region18: #{tpu_custom_call.1} parent=1 // pred_check
      _
    $region19: #{tpu_custom_call.1} parent=1 // pred_check_branch
      %41 = sbr.rel (0) target = $region21
    $region20: #{tpu_custom_call.1} parent=1 // pred_region
      %42 = dma.done [#allocation6], 256
    $region21: #{tpu_custom_call.1} parent=1 // pred_fallthru
      _
    %v44 = vld [vmem:[#allocation2] sm:$0xf]
    %v45 = vld [vmem:[#allocation2 + $0x4] sm:$0xf]
    %v46 = vld [vmem:[#allocation5] sm:$0xf]
    %v47 = vld [vmem:[#allocation5 + $0x4] sm:$0xf]
    %v48 = vld [vmem:[#allocation5 + $0x8] sm:$0xf]
    %v49 = vld [vmem:[#allocation5 + $0xc] sm:$0xf]
    %v50 = vld [vmem:[%s2] sm:$0x1]
    %v52 = vlaneseq
    %v53 = vshrl.u32 %v52, 7
    %v54 = vsub.s32 0, %v53
    %v55 = vrot.slane %v50, %v54
    %v59 = vunpack.c.l.b16 %v44
    %v60 = vunpack.c.l.b16 %v45
    %v61 = vpack.c.b16 %v60, %v59
    %v66 = vunpack.c.l.b16 %v46
    %v67 = vunpack.c.l.b16 %v47
    %v68 = vunpack.c.l.b16 %v48
    %v69 = vunpack.c.l.b16 %v49
    %v70 = vpack.c.b16 %v67, %v66
    %v71 = vpack.c.b16 %v69, %v68
    %vm74 = vcmask 261120
    %v76 = vsel %vm74, %v61, 0
    %78 = vmatprep.subr.bf16.mxu0 0
    %79 = vmatpush1.bf16.msra.mxu0 0
    %80 = vmatprep.subr.bf16.mxu0 0
    %81 = vmatpush1.bf16.msra.mxu0 0
    %82 = vmatprep.subr.bf16.mxu0 0
    %83 = vmatpush1.bf16.msra.mxu0 0
    %84 = vmatprep.subr.bf16.mxu0 0
    %85 = vmatpush1.bf16.msra.mxu0 0
    %86 = vmatprep.subr.bf16.mxu0 0
    %87 = vmatpush1.bf16.msra.mxu0 0
    %88 = vmatprep.subr.bf16.mxu0 0
    %89 = vmatpush1.bf16.msra.mxu0 0
    %90 = vmatprep.subr.bf16.mxu0 0
    %91 = vmatpush1.bf16.msra.mxu0 %v71
    %92 = vmatprep.subr.bf16.mxu0 0
    %93 = vmatpush1.bf16.msra.mxu0 %v70
    %94 = vmatprep.subr.bf16.mxu0 0
    %95 = vmatpush2.bf16.msra.mxu0 0
    %96 = vmatprep.subr.bf16.mxu0 0
    %97 = vmatpush2.bf16.msra.mxu0 0
    %98 = vmatprep.subr.bf16.mxu0 0
    %99 = vmatpush2.bf16.msra.mxu0 0
    %100 = vmatprep.subr.bf16.mxu0 0
    %101 = vmatpush2.bf16.msra.mxu0 0
    %102 = vmatprep.subr.bf16.mxu0 0
    %103 = vmatpush2.bf16.msra.mxu0 0
    %104 = vmatprep.subr.bf16.mxu0 0
    %105 = vmatpush2.bf16.msra.mxu0 0
    %106 = vmatprep.subr.bf16.mxu0 0
    %107 = vmatpush2.bf16.msra.mxu0 0
    %108 = vmatprep.subr.bf16.mxu0 0
    %109 = vmatpush2.bf16.msra.mxu0 0
    %110 = vmatprep.mubr.bf16.mxu0 0
    %111 = vmatmul.mubr.bf16.gmra.mxu0 %v76
    %v112 = vpop.f32.mrf.mxu0
    %v113 = vadd.f32 %v55, %v112
    %v114 = vpop.f32.mrf.mxu0
    %v115 = vpop.f32.mrf.mxu0
    %v116 = vadd.f32 %v55, %v115
    %v117 = vpop.f32.mrf.mxu0
    %118 = vdwg.mxu0
    %119 = vst [vmem:[#allocation7] sm:$0xff] %v113
    %120 = vst [vmem:[#allocation7 + $0x8] sm:$0xff] %v116
    // Predicated region
    $region22: #{tpu_custom_call.1} parent=1 // pred_check
      _
    $region23: #{tpu_custom_call.1} parent=1 // pred_check_branch
      %122 = sbr.rel (0) target = $region25
    $region24: #{tpu_custom_call.1} parent=1 // pred_region
      %s124 = ssub.s32 256, 256
      %125 = vsyncadd [#allocation4], %s124
      %s126 = sshll.u32 [#allocation7], 4
      %s127 = int_to_ptr.vmem [resolvable:$true] %s126
      %132 = dma.vmem_to_hbm [thread:$0]  %s127, 256, %s3, [#allocation4], 128, 128, 8
    $region25: #{tpu_custom_call.1} parent=1 // pred_fallthru
      _
    // Predicated region
    $region26: #{tpu_custom_call.1} parent=1 // pred_check
      _
    $region27: #{tpu_custom_call.1} parent=1 // pred_check_branch
      %134 = sbr.rel (0) target = $region29
    $region28: #{tpu_custom_call.1} parent=1 // pred_region
      %135 = dma.done [#allocation4], 256
    $region29: #{tpu_custom_call.1} parent=1 // pred_fallthru
      _
    %136 = vsyncpa [#allocation3], 1
    %137 = vsyncpa [#allocation6], 1
    %138 = vsyncpa [#allocation4], 1

</llo_original>
